<compile_context>
chip_gen: v7x
topology: tpu7x:2x2x1
jax: 0.10.0
libtpu: 0.0.40
codegen_flags: <defaults>
</compile_context>

<pallas_src>
import jax
import jax.numpy as jnp
from jax.experimental import pallas as pl
from jax.experimental.pallas import tpu as pltpu

HID1, HID2 = 80, 40        # LocalActivationUnit hidden sizes [80, 40] -> 1
H_PAD = 128                # padded hidden width (80 -> full 128-lane vreg)
BN_EPS = 1e-9              # Dice BatchNorm1d eps


def _lau_kernel(q_ref, ub_ref, wqd_ref, wud_ref, wp_ref, b1_ref,
                scale_ref, shift_ref, alpha_ref, w23_ref, b23_ref, out_ref):
    bt, tt, e = ub_ref.shape
    h = wqd_ref.shape[1]

    q = q_ref[...]                                        # (bt, 1, e)
    ub = ub_ref[...]                                      # (bt, tt, e)

    # Query-only term of Linear(4E,80) plus its bias: once per batch row,
    # broadcast over T below (keeps the per-element work off this path).
    q_term = (jnp.dot(q.reshape(bt, e), wqd_ref[...],
                      preferred_element_type=jnp.float32)
              + b1_ref[...])                              # (bt, h)

    ub2 = ub.reshape(bt * tt, e)
    qub2 = (q * ub).reshape(bt * tt, e)                   # q broadcasts over T

    h1 = (jnp.dot(ub2, wud_ref[...], preferred_element_type=jnp.float32) +
          jnp.dot(qub2, wp_ref[...], preferred_element_type=jnp.float32))
    h1 = h1.reshape(bt, tt, h) + q_term[:, None, :]       # (bt, tt, h)

    # Dice(80, dim=3), eval mode: BN folded to per-channel scale/shift.
    # Gate = alpha + (1-alpha)*sigmoid(xn); (1-alpha) is a (1,h) op, not
    # per-element, so Dice costs 3 VPU ops + 1 EUP op per element after BN.
    xn = h1 * scale_ref[...] + shift_ref[...]
    x_p = jax.nn.sigmoid(xn)
    oma = 1.0 - alpha_ref[...]                            # (1, h)
    d = h1 * (alpha_ref[...] + oma * x_p)

    # Dropout(0.5) is identity in eval mode.
    # Fused Linear(80,40)->Linear(40,1): score = sum(d * w23, -1) + b23.
    out_ref[...] = jnp.sum(d * w23_ref[...], axis=-1) + b23_ref[...]


def _choose_tiles(B, T):
    """Biggest (bt, tt) that keep per-step VMEM modest and satisfy the (8,128)
    tiling rules for every BlockSpec (dims divisible by 8/128 or full)."""
    MAX_ROWS = 4096            # bt*tt rows; ~2 KiB of f32 temps per row ≈ 8 MiB
    if B * T <= MAX_ROWS:
        return B, T
    tt = T
    if T % 128 == 0:
        tt = 128
        while tt * 2 <= T and T % (tt * 2) == 0 and B * (tt * 2) <= MAX_ROWS:
            tt *= 2
    bt = B
    if B * tt > MAX_ROWS and B % 8 == 0:
        bt = 8
        while bt * 2 <= B and B % (bt * 2) == 0 and (bt * 2) * tt <= MAX_ROWS:
            bt *= 2
    return bt, tt


def init_params(key, embedding_dim):
    """Deterministic synthetic parameters matching the PyTorch __init__ shapes."""
    in1 = 4 * embedding_dim
    k1, k2, k3 = jax.random.split(key, 3)

    def xavier_normal(k, fan_out, fan_in):          # nn.init.xavier_normal_, gain=1
        std = (2.0 / (fan_in + fan_out)) ** 0.5
        return std * jax.random.normal(k, (fan_out, fan_in), jnp.float32)

    return dict(
        w1=xavier_normal(k1, HID1, in1),            # Linear(4E, 80).weight
        b1=jnp.zeros((HID1,), jnp.float32),
        w2=xavier_normal(k2, HID2, HID1),           # Linear(80, 40).weight
        b2=jnp.zeros((HID2,), jnp.float32),
        w3=xavier_normal(k3, 1, HID2),              # Linear(40, 1).weight
        b3=jnp.zeros((1,), jnp.float32),
        gamma=jnp.ones((HID1,), jnp.float32),       # Dice BN affine
        beta=jnp.zeros((HID1,), jnp.float32),
        rm=jnp.zeros((HID1,), jnp.float32),         # BN running stats
        rv=jnp.ones((HID1,), jnp.float32),
        alpha=jnp.zeros((HID1,), jnp.float32),      # Dice alpha buffer (zeros)
    )


def local_activation_unit(query, user_behavior, p):
    B, Tq, E = query.shape
    assert Tq == 1
    B2, T, E2 = user_behavior.shape
    assert B2 == B and E2 == E
    f32 = jnp.float32

    padc = lambda m: jnp.pad(m, ((0, 0), (0, H_PAD - m.shape[1])))      # (E,80)->(E,128)
    padr = lambda v: jnp.pad(v, (0, H_PAD - v.shape[0])).reshape(1, H_PAD)

    # Eval-mode Dice BN folded into per-channel scale/shift.
    scale = p["gamma"] / jnp.sqrt(p["rv"] + BN_EPS)
    shift = p["beta"] - p["rm"] * scale

    # Split Linear(4E,80) so the [q, ub, q-ub, q*ub] concat never materializes.
    w1t = p["w1"].T.astype(f32)                  # (4E, 80)
    wq, wu, wd, wprod = w1t[:E], w1t[E:2 * E], w1t[2 * E:3 * E], w1t[3 * E:]
    wqd = padc(wq + wd)                          # applied to q (once per row)
    wud = padc(wu - wd)                          # applied to ub
    wprod = padc(wprod)                          # applied to q*ub

    # Fuse Linear(80,40) -> Linear(40,1): exact, no nonlinearity in between.
    w23 = (p["w2"].T @ p["w3"].T)[:, 0].astype(f32)                     # (80,)
    b23 = (p["b2"] @ p["w3"].T + p["b3"]).reshape(1, 1).astype(f32)

    args = (
        query.astype(f32),
        user_behavior.astype(f32),
        wqd, wud, wprod,
        padr(p["b1"].astype(f32)),
        padr(scale.astype(f32)),
        padr(shift.astype(f32)),
        padr(p["alpha"].astype(f32)),
        padr(w23),
        b23,
    )

    bt, tt = _choose_tiles(B, T)
    grid = (pl.cdiv(B, bt), pl.cdiv(T, tt))
    const = lambda bi, ti: (0, 0)

    in_specs = [
        pl.BlockSpec((bt, 1, E), lambda bi, ti: (bi, 0, 0)),      # query
        pl.BlockSpec((bt, tt, E), lambda bi, ti: (bi, ti, 0)),    # user_behavior
        pl.BlockSpec((E, H_PAD), const),                          # wqd (resident)
        pl.BlockSpec((E, H_PAD), const),                          # wud
        pl.BlockSpec((E, H_PAD), const),                          # wprod
        pl.BlockSpec((1, H_PAD), const),                          # b1
        pl.BlockSpec((1, H_PAD), const),                          # scale
        pl.BlockSpec((1, H_PAD), const),                          # shift
        pl.BlockSpec((1, H_PAD), const),                          # alpha
        pl.BlockSpec((1, H_PAD), const),                          # w23
        pl.BlockSpec((1, 1), const),                              # b23
    ]
    out_specs = pl.BlockSpec((bt, tt), lambda bi, ti: (bi, ti))   # lane-dense scores

    scores = pl.pallas_call(
        _lau_kernel,
        out_shape=jax.ShapeDtypeStruct((B, T), f32),
        grid=grid,
        in_specs=in_specs,
        out_specs=out_specs,
        compiler_params=pltpu.CompilerParams(
            dimension_semantics=("parallel", "parallel")),
    )(*args)

    # Match the torch module's output shape (B, T, 1).
    return scores.reshape(B, T, 1)


def reference(query, user_behavior, p):
    """Pure-JAX eval-mode reference of LocalActivationUnit.forward."""
    B, T, E = user_behavior.shape
    queries = jnp.broadcast_to(query, (B, T, E))
    att_in = jnp.concatenate(
        [queries, user_behavior, queries - user_behavior,
         queries * user_behavior], axis=-1)                       # (B, T, 4E)
    h1 = att_in @ p["w1"].T + p["b1"]                             # (B, T, 80)
    xn = (h1 - p["rm"]) / jnp.sqrt(p["rv"] + BN_EPS) * p["gamma"] + p["beta"]
    x_p = jax.nn.sigmoid(xn)
    d = p["alpha"] * (1 - x_p) * h1 + x_p * h1                    # Dice; Dropout=id
    h2 = d @ p["w2"].T + p["b2"]                                  # (B, T, 40)
    s = h2 @ p["w3"].T + p["b3"]                                  # (B, T, 1)
    return s


if __name__ == "__main__":
    key = jax.random.PRNGKey(0)
    kq, kub, kp = jax.random.split(key, 3)

    B, T, E = 2, 8, 4                                # embedding_dim=4 (module default)
    query = jax.random.normal(kq, (B, 1, E), jnp.float32)
    user_behavior = jax.random.normal(kub, (B, T, E), jnp.float32)
    params = init_params(kp, E)

    out = local_activation_unit(query, user_behavior, params)
    out = jax.block_until_ready(out)

    ref = reference(query, user_behavior, params)
    assert out.shape == (B, T, 1)
    assert jnp.allclose(out, ref, atol=1e-5, rtol=1e-5)

    print("KERNEL_OK")
</pallas_src>

<mosaic_0001>
module attributes {stable_mosaic.version = 11 : i64} {
  func.func @_lau_kernel(%arg0: i32, %arg1: i32, %arg2: memref<2x1x4xf32, #tpu.memory_space<vmem>>, %arg3: memref<2x8x4xf32, #tpu.memory_space<vmem>>, %arg4: memref<4x128xf32, #tpu.memory_space<vmem>>, %arg5: memref<4x128xf32, #tpu.memory_space<vmem>>, %arg6: memref<4x128xf32, #tpu.memory_space<vmem>>, %arg7: memref<1x128xf32, #tpu.memory_space<vmem>>, %arg8: memref<1x128xf32, #tpu.memory_space<vmem>>, %arg9: memref<1x128xf32, #tpu.memory_space<vmem>>, %arg10: memref<1x128xf32, #tpu.memory_space<vmem>>, %arg11: memref<1x128xf32, #tpu.memory_space<vmem>>, %arg12: memref<1x1xf32, #tpu.memory_space<vmem>>, %arg13: memref<2x8xf32, #tpu.memory_space<vmem>>) attributes {dimension_semantics = [#tpu.dimension_semantics<parallel>, #tpu.dimension_semantics<parallel>], iteration_bounds = array<i64: 1, 1>, scalar_prefetch = 0 : i64, scratch_operands = 0 : i64, tpu.core_type = #tpu.core_type<tc>, window_params = [{transform_indices = @transform_0, window_bounds = array<i64: 2, 1, 4>}, {transform_indices = @transform_1, window_bounds = array<i64: 2, 8, 4>}, {pipeline_mode = #tpu.pipeline_mode<synchronous>, transform_indices = @transform_2, window_bounds = array<i64: 4, 128>}, {pipeline_mode = #tpu.pipeline_mode<synchronous>, transform_indices = @transform_3, window_bounds = array<i64: 4, 128>}, {pipeline_mode = #tpu.pipeline_mode<synchronous>, transform_indices = @transform_4, window_bounds = array<i64: 4, 128>}, {pipeline_mode = #tpu.pipeline_mode<synchronous>, transform_indices = @transform_5, window_bounds = array<i64: 1, 128>}, {pipeline_mode = #tpu.pipeline_mode<synchronous>, transform_indices = @transform_6, window_bounds = array<i64: 1, 128>}, {pipeline_mode = #tpu.pipeline_mode<synchronous>, transform_indices = @transform_7, window_bounds = array<i64: 1, 128>}, {pipeline_mode = #tpu.pipeline_mode<synchronous>, transform_indices = @transform_8, window_bounds = array<i64: 1, 128>}, {pipeline_mode = #tpu.pipeline_mode<synchronous>, transform_indices = @transform_9, window_bounds = array<i64: 1, 128>}, {pipeline_mode = #tpu.pipeline_mode<synchronous>, transform_indices = @transform_10, window_bounds = array<i64: 1, 1>}, {transform_indices = @transform_11, window_bounds = array<i64: 2, 8>}]} {
    %c0 = arith.constant 0 : index
    %c0_0 = arith.constant 0 : index
    %c0_1 = arith.constant 0 : index
    %0 = vector.load %arg2[%c0, %c0_0, %c0_1] : memref<2x1x4xf32, #tpu.memory_space<vmem>>, vector<2x1x4xf32>
    %c0_2 = arith.constant 0 : index
    %c0_3 = arith.constant 0 : index
    %c0_4 = arith.constant 0 : index
    %1 = vector.load %arg3[%c0_2, %c0_3, %c0_4] : memref<2x8x4xf32, #tpu.memory_space<vmem>>, vector<2x8x4xf32>
    %2 = vector.shape_cast %0 : vector<2x1x4xf32> to vector<2x4xf32>
    %c0_5 = arith.constant 0 : index
    %c0_6 = arith.constant 0 : index
    %3 = vector.load %arg4[%c0_5, %c0_6] : memref<4x128xf32, #tpu.memory_space<vmem>>, vector<4x128xf32>
    %cst = arith.constant dense<0.000000e+00> : vector<2x128xf32>
    %4 = tpu.matmul %2, %3, %cst {dimension_numbers = #tpu.dot_dimension_numbers<[1], [0], [0], [1], [0, 0, 1, 1], [], []>} : vector<2x4xf32>, vector<4x128xf32>, vector<2x128xf32> -> vector<2x128xf32>
    %c0_7 = arith.constant 0 : index
    %c0_8 = arith.constant 0 : index
    %5 = vector.load %arg7[%c0_7, %c0_8] : memref<1x128xf32, #tpu.memory_space<vmem>>, vector<1x128xf32>
    %6 = vector.broadcast %5 : vector<1x128xf32> to vector<2x128xf32>
    %7 = arith.addf %4, %6 : vector<2x128xf32>
    %8 = vector.shape_cast %1 : vector<2x8x4xf32> to vector<16x4xf32>
    %9 = vector.broadcast %0 : vector<2x1x4xf32> to vector<2x8x4xf32>
    %10 = arith.mulf %9, %1 : vector<2x8x4xf32>
    %11 = vector.shape_cast %10 : vector<2x8x4xf32> to vector<16x4xf32>
    %c0_9 = arith.constant 0 : index
    %c0_10 = arith.constant 0 : index
    %12 = vector.load %arg5[%c0_9, %c0_10] : memref<4x128xf32, #tpu.memory_space<vmem>>, vector<4x128xf32>
    %cst_11 = arith.constant dense<0.000000e+00> : vector<16x128xf32>
    %13 = tpu.matmul %8, %12, %cst_11 {dimension_numbers = #tpu.dot_dimension_numbers<[1], [0], [0], [1], [0, 0, 1, 1], [], []>} : vector<16x4xf32>, vector<4x128xf32>, vector<16x128xf32> -> vector<16x128xf32>
    %c0_12 = arith.constant 0 : index
    %c0_13 = arith.constant 0 : index
    %14 = vector.load %arg6[%c0_12, %c0_13] : memref<4x128xf32, #tpu.memory_space<vmem>>, vector<4x128xf32>
    %cst_14 = arith.constant dense<0.000000e+00> : vector<16x128xf32>
    %15 = tpu.matmul %11, %14, %cst_14 {dimension_numbers = #tpu.dot_dimension_numbers<[1], [0], [0], [1], [0, 0, 1, 1], [], []>} : vector<16x4xf32>, vector<4x128xf32>, vector<16x128xf32> -> vector<16x128xf32>
    %16 = arith.addf %13, %15 : vector<16x128xf32>
    %17 = vector.shape_cast %16 : vector<16x128xf32> to vector<2x8x128xf32>
    %18 = vector.shape_cast %7 : vector<2x128xf32> to vector<2x1x128xf32>
    %19 = vector.broadcast %18 : vector<2x1x128xf32> to vector<2x8x128xf32>
    %20 = arith.addf %17, %19 : vector<2x8x128xf32>
    %c0_15 = arith.constant 0 : index
    %c0_16 = arith.constant 0 : index
    %21 = vector.load %arg8[%c0_15, %c0_16] : memref<1x128xf32, #tpu.memory_space<vmem>>, vector<1x128xf32>
    %22 = vector.shape_cast %21 : vector<1x128xf32> to vector<1x1x128xf32>
    %23 = vector.broadcast %22 : vector<1x1x128xf32> to vector<2x8x128xf32>
    %24 = arith.mulf %20, %23 : vector<2x8x128xf32>
    %c0_17 = arith.constant 0 : index
    %c0_18 = arith.constant 0 : index
    %25 = vector.load %arg9[%c0_17, %c0_18] : memref<1x128xf32, #tpu.memory_space<vmem>>, vector<1x128xf32>
    %26 = vector.shape_cast %25 : vector<1x128xf32> to vector<1x1x128xf32>
    %27 = vector.broadcast %26 : vector<1x1x128xf32> to vector<2x8x128xf32>
    %28 = arith.addf %24, %27 : vector<2x8x128xf32>
    %29 = arith.negf %28 : vector<2x8x128xf32>
    %30 = math.exp %29 : vector<2x8x128xf32>
    %cst_19 = arith.constant 1.000000e+00 : f32
    %31 = vector.broadcast %cst_19 : f32 to vector<2x8x128xf32>
    %32 = arith.addf %31, %30 : vector<2x8x128xf32>
    %33 = arith.divf %31, %32 : vector<2x8x128xf32>
    %c0_20 = arith.constant 0 : index
    %c0_21 = arith.constant 0 : index
    %34 = vector.load %arg10[%c0_20, %c0_21] : memref<1x128xf32, #tpu.memory_space<vmem>>, vector<1x128xf32>
    %cst_22 = arith.constant 1.000000e+00 : f32
    %35 = vector.broadcast %cst_22 : f32 to vector<1x128xf32>
    %36 = arith.subf %35, %34 : vector<1x128xf32>
    %c0_23 = arith.constant 0 : index
    %c0_24 = arith.constant 0 : index
    %37 = vector.load %arg10[%c0_23, %c0_24] : memref<1x128xf32, #tpu.memory_space<vmem>>, vector<1x128xf32>
    %38 = vector.shape_cast %36 : vector<1x128xf32> to vector<1x1x128xf32>
    %39 = vector.broadcast %38 : vector<1x1x128xf32> to vector<2x8x128xf32>
    %40 = arith.mulf %39, %33 : vector<2x8x128xf32>
    %41 = vector.shape_cast %37 : vector<1x128xf32> to vector<1x1x128xf32>
    %42 = vector.broadcast %41 : vector<1x1x128xf32> to vector<2x8x128xf32>
    %43 = arith.addf %42, %40 : vector<2x8x128xf32>
    %44 = arith.mulf %20, %43 : vector<2x8x128xf32>
    %c0_25 = arith.constant 0 : index
    %c0_26 = arith.constant 0 : index
    %45 = vector.load %arg11[%c0_25, %c0_26] : memref<1x128xf32, #tpu.memory_space<vmem>>, vector<1x128xf32>
    %46 = vector.shape_cast %45 : vector<1x128xf32> to vector<1x1x128xf32>
    %47 = vector.broadcast %46 : vector<1x1x128xf32> to vector<2x8x128xf32>
    %48 = arith.mulf %44, %47 : vector<2x8x128xf32>
    %cst_27 = arith.constant dense<0.000000e+00> : vector<2x8xf32>
    %49 = vector.multi_reduction <add>, %48, %cst_27 [2] : vector<2x8x128xf32> to vector<2x8xf32>
    %c0_28 = arith.constant 0 : index
    %c0_29 = arith.constant 0 : index
    %50 = vector.load %arg12[%c0_28, %c0_29] : memref<1x1xf32, #tpu.memory_space<vmem>>, vector<1x1xf32>
    %51 = vector.broadcast %50 : vector<1x1xf32> to vector<2x8xf32>
    %52 = arith.addf %49, %51 : vector<2x8xf32>
    %c0_30 = arith.constant 0 : index
    %c0_31 = arith.constant 0 : index
    %53 = vector.load %arg13[%c0_30, %c0_31] : memref<2x8xf32, #tpu.memory_space<vmem>>, vector<2x8xf32>
    tpu.vector_store %arg13[%c0_30, %c0_31], %52 {strides = array<i32>} : memref<2x8xf32, #tpu.memory_space<vmem>>, vector<2x8xf32>,
    return
  }
  func.func @transform_0(%arg0: i32, %arg1: i32) -> (i32, i32, i32) {
    %c0_i32 = arith.constant 0 : i32
    %c0_i32_0 = arith.constant 0 : i32
    %c0_i32_1 = arith.constant 0 : i32
    return %arg0, %c0_i32, %c0_i32_0 : i32, i32, i32
  }
  func.func @transform_1(%arg0: i32, %arg1: i32) -> (i32, i32, i32) {
    %c0_i32 = arith.constant 0 : i32
    %c0_i32_0 = arith.constant 0 : i32
    return %arg0, %arg1, %c0_i32 : i32, i32, i32
  }
  func.func @transform_2(%arg0: i32, %arg1: i32) -> (i32, i32) {
    %c0_i32 = arith.constant 0 : i32
    %c0_i32_0 = arith.constant 0 : i32
    %c0_i32_1 = arith.constant 0 : i32
    return %c0_i32, %c0_i32_0 : i32, i32
  }
  func.func @transform_3(%arg0: i32, %arg1: i32) -> (i32, i32) {
    %c0_i32 = arith.constant 0 : i32
    %c0_i32_0 = arith.constant 0 : i32
    %c0_i32_1 = arith.constant 0 : i32
    return %c0_i32, %c0_i32_0 : i32, i32
  }
  func.func @transform_4(%arg0: i32, %arg1: i32) -> (i32, i32) {
    %c0_i32 = arith.constant 0 : i32
    %c0_i32_0 = arith.constant 0 : i32
    %c0_i32_1 = arith.constant 0 : i32
    return %c0_i32, %c0_i32_0 : i32, i32
  }
  func.func @transform_5(%arg0: i32, %arg1: i32) -> (i32, i32) {
    %c0_i32 = arith.constant 0 : i32
    %c0_i32_0 = arith.constant 0 : i32
    %c0_i32_1 = arith.constant 0 : i32
    return %c0_i32, %c0_i32_0 : i32, i32
  }
  func.func @transform_6(%arg0: i32, %arg1: i32) -> (i32, i32) {
    %c0_i32 = arith.constant 0 : i32
    %c0_i32_0 = arith.constant 0 : i32
    %c0_i32_1 = arith.constant 0 : i32
    return %c0_i32, %c0_i32_0 : i32, i32
  }
  func.func @transform_7(%arg0: i32, %arg1: i32) -> (i32, i32) {
    %c0_i32 = arith.constant 0 : i32
    %c0_i32_0 = arith.constant 0 : i32
    %c0_i32_1 = arith.constant 0 : i32
    return %c0_i32, %c0_i32_0 : i32, i32
  }
  func.func @transform_8(%arg0: i32, %arg1: i32) -> (i32, i32) {
    %c0_i32 = arith.constant 0 : i32
    %c0_i32_0 = arith.constant 0 : i32
    %c0_i32_1 = arith.constant 0 : i32
    return %c0_i32, %c0_i32_0 : i32, i32
  }
  func.func @transform_9(%arg0: i32, %arg1: i32) -> (i32, i32) {
    %c0_i32 = arith.constant 0 : i32
    %c0_i32_0 = arith.constant 0 : i32
    %c0_i32_1 = arith.constant 0 : i32
    return %c0_i32, %c0_i32_0 : i32, i32
  }
  func.func @transform_10(%arg0: i32, %arg1: i32) -> (i32, i32) {
    %c0_i32 = arith.constant 0 : i32
    %c0_i32_0 = arith.constant 0 : i32
    %c0_i32_1 = arith.constant 0 : i32
    return %c0_i32, %c0_i32_0 : i32, i32
  }
  func.func @transform_11(%arg0: i32, %arg1: i32) -> (i32, i32) {
    %c0_i32 = arith.constant 0 : i32
    return %arg0, %arg1 : i32, i32
  }
}

</mosaic_0001>

<llo_original>
// kernel: tpu_custom_call.1
$region0: #{tpu_custom_call.1}
  #allocation0 [shape = 'u32[]', space=smem, size = 0x4, offset = 0x4, fixed_abs, tag = 'smem constant byte address 0x4 - core index']
  #allocation1 [shape = 'u32[144,128]{1,0:T(1,128)}', space=vmem, size = 0x12000, scoped, tag = 'internal scratch']
  #allocation2 [shape = 'f32[1,1]{1,0:T(1,128)S(1)}', space=vmem, size = 0x200, scoped, tag = 'scoped memory for tpu_custom_call.1']
  %s0 = inlined_call_operand.vmem [shape: f32[2,1,4], index: 0, kind: input, shape index: {}]
  %s1 = inlined_call_operand.vmem [shape: f32[2,8,4], index: 1, kind: input, shape index: {}]
  %s2 = inlined_call_operand.vmem [shape: f32[4,128], index: 2, kind: input, shape index: {}]
  %s3 = inlined_call_operand.vmem [shape: f32[4,128], index: 3, kind: input, shape index: {}]
  %s4 = inlined_call_operand.vmem [shape: f32[4,128], index: 4, kind: input, shape index: {}]
  %s5 = inlined_call_operand.vmem [shape: f32[1,128], index: 5, kind: input, shape index: {}]
  %s6 = inlined_call_operand.vmem [shape: f32[1,128], index: 6, kind: input, shape index: {}]
  %s7 = inlined_call_operand.vmem [shape: f32[1,128], index: 7, kind: input, shape index: {}]
  %s8 = inlined_call_operand.vmem [shape: f32[1,128], index: 8, kind: input, shape index: {}]
  %s9 = inlined_call_operand.vmem [shape: f32[1,128], index: 9, kind: input, shape index: {}]
  %s10 = inlined_call_operand.<no memory space> [shape: f32[1,1], index: 10, kind: input, shape index: {}]
  %s11 = inlined_call_operand.hbm [shape: f32[2,8], index: 11, kind: output, shape index: {}]
  %s12 = sld [smem:[#allocation0]]
  $region54: #{tpu_custom_call.1} parent=0
    _
  %s14 = ssub.s32 1, %s12
  %s15 = scalar_select 0, %s14, %s12
  %v16 = vstv %s10
  %17 = vst [vmem:[#allocation2] sm:$0x1] %v16
  $region1: #{tpu_custom_call.1} parent=0
    #allocation3 [shape = 'u8[1024]{0}', space=vmem, size = 0x400, scoped, tag = 'output window, operand 0, single buffered']
    #allocation4 [shape = 's32[1]{0}', space=sflag, size = 0x4, scoped, tag = 'scoped memory for tpu_custom_call.1']
    %18 = vsyncpa [#allocation4], 0
    // Predicated region
    $region2: #{tpu_custom_call.1} parent=1 // pred_check
      _
    $region3: #{tpu_custom_call.1} parent=1 // pred_check_branch
      %20 = sbr.rel (0) target = $region5
    $region4: #{tpu_custom_call.1} parent=1 // pred_region
      _
    $region5: #{tpu_custom_call.1} parent=1 // pred_fallthru
      _
    // Predicated region
    $region6: #{tpu_custom_call.1} parent=1 // pred_check
      _
    $region7: #{tpu_custom_call.1} parent=1 // pred_check_branch
      %22 = sbr.rel (0) target = $region9
    $region8: #{tpu_custom_call.1} parent=1 // pred_region
      _
    $region9: #{tpu_custom_call.1} parent=1 // pred_fallthru
      _
    // Predicated region
    $region10: #{tpu_custom_call.1} parent=1 // pred_check
      _
    $region11: #{tpu_custom_call.1} parent=1 // pred_check_branch
      %24 = sbr.rel (0) target = $region13
    $region12: #{tpu_custom_call.1} parent=1 // pred_region
      _
    $region13: #{tpu_custom_call.1} parent=1 // pred_fallthru
      _
    // Predicated region
    $region14: #{tpu_custom_call.1} parent=1 // pred_check
      _
    $region15: #{tpu_custom_call.1} parent=1 // pred_check_branch
      %26 = sbr.rel (0) target = $region17
    $region16: #{tpu_custom_call.1} parent=1 // pred_region
      _
    $region17: #{tpu_custom_call.1} parent=1 // pred_fallthru
      _
    // Predicated region
    $region18: #{tpu_custom_call.1} parent=1 // pred_check
      _
    $region19: #{tpu_custom_call.1} parent=1 // pred_check_branch
      %28 = sbr.rel (0) target = $region21
    $region20: #{tpu_custom_call.1} parent=1 // pred_region
      _
    $region21: #{tpu_custom_call.1} parent=1 // pred_fallthru
      _
    // Predicated region
    $region22: #{tpu_custom_call.1} parent=1 // pred_check
      _
    $region23: #{tpu_custom_call.1} parent=1 // pred_check_branch
      %30 = sbr.rel (0) target = $region25
    $region24: #{tpu_custom_call.1} parent=1 // pred_region
      _
    $region25: #{tpu_custom_call.1} parent=1 // pred_fallthru
      _
    // Predicated region
    $region26: #{tpu_custom_call.1} parent=1 // pred_check
      _
    $region27: #{tpu_custom_call.1} parent=1 // pred_check_branch
      %32 = sbr.rel (0) target = $region29
    $region28: #{tpu_custom_call.1} parent=1 // pred_region
      _
    $region29: #{tpu_custom_call.1} parent=1 // pred_fallthru
      _
    // Predicated region
    $region30: #{tpu_custom_call.1} parent=1 // pred_check
      _
    $region31: #{tpu_custom_call.1} parent=1 // pred_check_branch
      %34 = sbr.rel (0) target = $region33
    $region32: #{tpu_custom_call.1} parent=1 // pred_region
      _
    $region33: #{tpu_custom_call.1} parent=1 // pred_fallthru
      _
    // Predicated region
    $region34: #{tpu_custom_call.1} parent=1 // pred_check
      _
    $region35: #{tpu_custom_call.1} parent=1 // pred_check_branch
      %36 = sbr.rel (0) target = $region37
    $region36: #{tpu_custom_call.1} parent=1 // pred_region
      _
    $region37: #{tpu_custom_call.1} parent=1 // pred_fallthru
      _
    // Predicated region
    $region38: #{tpu_custom_call.1} parent=1 // pred_check
      _
    $region39: #{tpu_custom_call.1} parent=1 // pred_check_branch
      %38 = sbr.rel (0) target = $region41
    $region40: #{tpu_custom_call.1} parent=1 // pred_region
      _
    $region41: #{tpu_custom_call.1} parent=1 // pred_fallthru
      _
    // Predicated region
    $region42: #{tpu_custom_call.1} parent=1 // pred_check
      _
    $region43: #{tpu_custom_call.1} parent=1 // pred_check_branch
      %40 = sbr.rel (0) target = $region45
    $region44: #{tpu_custom_call.1} parent=1 // pred_region
      _
    $region45: #{tpu_custom_call.1} parent=1 // pred_fallthru
      _
    %v41 = vld [vmem:[%s0] sm:$0x1]
    %v42 = vld [vmem:[%s0 + $0x1] sm:$0x1]
    %v43 = vld [vmem:[%s1] sm:$0xff]
    %v44 = vld [vmem:[%s1 + $0x8] sm:$0xff]
    %v45 = vld [vmem:[%s2] sm:$0xf]
    %v46 = vld [vmem:[%s5] sm:$0x1]
    %v48 = vlaneseq
    %v49 = vshrl.u32 %v48, 7
    %v50 = vsub.s32 0, %v49
    %v51 = vrot.slane %v46, %v50
    %v55 = vcombine.low %v41, %v42
    %v57 = vunpack.c.l.s4 1966171168
    %v58 = vunpack.c.0.s8 %v57
    %v59 = vlaneseq
    %v60 = vshrl.u32 %v59, 7
    %v61 = vsub.s32 %v58, %v60
    %v62 = vrot.slane %v55, %v61
    %v64 = vunpack.c.l.s4 1966171168
    %v65 = vunpack.c.0.s8 %v64
    %v66 = vlaneseq
    %v67 = vshrl.u32 %v66, 7
    %v68 = vsub.s32 %v65, %v67
    %v69 = vrot.slane %v62, %v68
    %vm70 = vcmask 31744
    %v71 = vsel %vm70, %v69, 0
    %vm73 = vcmask 1043456
    %v75 = vsel %vm73, %v45, 0
    %77 = vmatprep.subr.mxu0 0.0
    %78 = vmatpush1.msra.mxu0 %v75
    %79 = vmatprep.subr.mxu0 0.0
    %80 = vmatpush1.msra.mxu0 0.0
    %81 = vmatprep.subr.mxu0 0.0
    %82 = vmatpush1.msra.mxu0 0.0
    %83 = vmatprep.subr.mxu0 0.0
    %84 = vmatpush1.msra.mxu0 0.0
    %85 = vmatprep.subr.mxu0 0.0
    %86 = vmatpush1.msra.mxu0 0.0
    %87 = vmatprep.subr.mxu0 0.0
    %88 = vmatpush1.msra.mxu0 0.0
    %89 = vmatprep.subr.mxu0 0.0
    %90 = vmatpush1.msra.mxu0 0.0
    %91 = vmatprep.subr.mxu0 0.0
    %92 = vmatpush1.msra.mxu0 0.0
    %93 = vmatprep.subr.mxu0 0.0
    %94 = vmatpush1.msra.mxu0 0.0
    %95 = vmatprep.subr.mxu0 0.0
    %96 = vmatpush1.msra.mxu0 0.0
    %97 = vmatprep.subr.mxu0 0.0
    %98 = vmatpush1.msra.mxu0 0.0
    %99 = vmatprep.subr.mxu0 0.0
    %100 = vmatpush1.msra.mxu0 0.0
    %101 = vmatprep.subr.mxu0 0.0
    %102 = vmatpush1.msra.mxu0 0.0
    %103 = vmatprep.subr.mxu0 0.0
    %104 = vmatpush1.msra.mxu0 0.0
    %105 = vmatprep.subr.mxu0 0.0
    %106 = vmatpush1.msra.mxu0 0.0
    %107 = vmatprep.subr.mxu0 0.0
    %108 = vmatpush1.msra.mxu0 0.0
    %109 = vmatprep.subr.mxu0 0.0
    %110 = vmatpush1.msra.mxu0 0.0
    %111 = vmatprep.subr.mxu0 0.0
    %112 = vmatpush1.msra.mxu0 0.0
    %113 = vmatprep.subr.mxu0 0.0
    %114 = vmatpush1.msra.mxu0 0.0
    %115 = vmatprep.subr.mxu0 0.0
    %116 = vmatpush1.msra.mxu0 0.0
    %117 = vmatprep.subr.mxu0 0.0
    %118 = vmatpush1.msra.mxu0 0.0
    %119 = vmatprep.subr.mxu0 0.0
    %120 = vmatpush1.msra.mxu0 0.0
    %121 = vmatprep.subr.mxu0 0.0
    %122 = vmatpush1.msra.mxu0 0.0
    %123 = vmatprep.subr.mxu0 0.0
    %124 = vmatpush1.msra.mxu0 0.0
    %125 = vmatprep.subr.mxu0 0.0
    %126 = vmatpush1.msra.mxu0 0.0
    %127 = vmatprep.subr.mxu0 0.0
    %128 = vmatpush1.msra.mxu0 0.0
    %129 = vmatprep.subr.mxu0 0.0
    %130 = vmatpush1.msra.mxu0 0.0
    %131 = vmatprep.subr.mxu0 0.0
    %132 = vmatpush1.msra.mxu0 0.0
    %133 = vmatprep.subr.mxu0 0.0
    %134 = vmatpush1.msra.mxu0 0.0
    %135 = vmatprep.subr.mxu0 0.0
    %136 = vmatpush1.msra.mxu0 0.0
    %137 = vmatprep.subr.mxu0 0.0
    %138 = vmatpush1.msra.mxu0 0.0
    %139 = vmatprep.subr.mxu0 0.0
    %140 = vmatpush1.msra.mxu0 0.0
    %141 = vmatprep.mubr.f32.mxu0 0.0
    %142 = vmatmul.mubr.f32.gmra.mrb[0].mxu0 %v71
    %v143 = vpop.f32.mrb[0].mxu0
    %v144 = vadd.f32 %v51, %v143
    %v145 = vpop.f32.mrb[0].mxu0
    %146 = vdwg.mxu0
    %v147 = vlaneseq
    %v148 = vshrl.u32 %v147, 7
    %v149 = vsub.s32 0, %v148
    %v150 = vrot.slane %v41, %v149
    %v151 = vlaneseq
    %v152 = vshrl.u32 %v151, 7
    %v153 = vsub.s32 0, %v152
    %v154 = vrot.slane %v42, %v153
    %v157 = vmul.f32 %v150, %v43
    %v158 = vmul.f32 %v154, %v44
    %v159 = vld [vmem:[%s3] sm:$0xf]
    %v160 = vld [vmem:[%s4] sm:$0xf]
    %v162 = vsel %vm70, %v157, 0
    %v165 = vsel %vm70, %v158, 0
    %v168 = vsel %vm73, %v160, 0
    %170 = vmatprep.subr.mxu0 0.0
    %171 = vmatpush1.msra.mxu0 %v168
    %172 = vmatprep.subr.mxu0 0.0
    %173 = vmatpush1.msra.mxu0 0.0
    %174 = vmatprep.subr.mxu0 0.0
    %175 = vmatpush1.msra.mxu0 0.0
    %176 = vmatprep.subr.mxu0 0.0
    %177 = vmatpush1.msra.mxu0 0.0
    %178 = vmatprep.subr.mxu0 0.0
    %179 = vmatpush1.msra.mxu0 0.0
    %180 = vmatprep.subr.mxu0 0.0
    %181 = vmatpush1.msra.mxu0 0.0
    %182 = vmatprep.subr.mxu0 0.0
    %183 = vmatpush1.msra.mxu0 0.0
    %184 = vmatprep.subr.mxu0 0.0
    %185 = vmatpush1.msra.mxu0 0.0
    %186 = vmatprep.subr.mxu0 0.0
    %187 = vmatpush1.msra.mxu0 0.0
    %188 = vmatprep.subr.mxu0 0.0
    %189 = vmatpush1.msra.mxu0 0.0
    %190 = vmatprep.subr.mxu0 0.0
    %191 = vmatpush1.msra.mxu0 0.0
    %192 = vmatprep.subr.mxu0 0.0
    %193 = vmatpush1.msra.mxu0 0.0
    %194 = vmatprep.subr.mxu0 0.0
    %195 = vmatpush1.msra.mxu0 0.0
    %196 = vmatprep.subr.mxu0 0.0
    %197 = vmatpush1.msra.mxu0 0.0
    %198 = vmatprep.subr.mxu0 0.0
    %199 = vmatpush1.msra.mxu0 0.0
    %200 = vmatprep.subr.mxu0 0.0
    %201 = vmatpush1.msra.mxu0 0.0
    %202 = vmatprep.subr.mxu0 0.0
    %203 = vmatpush1.msra.mxu0 0.0
    %204 = vmatprep.subr.mxu0 0.0
    %205 = vmatpush1.msra.mxu0 0.0
    %206 = vmatprep.subr.mxu0 0.0
    %207 = vmatpush1.msra.mxu0 0.0
    %208 = vmatprep.subr.mxu0 0.0
    %209 = vmatpush1.msra.mxu0 0.0
    %210 = vmatprep.subr.mxu0 0.0
    %211 = vmatpush1.msra.mxu0 0.0
    %212 = vmatprep.subr.mxu0 0.0
    %213 = vmatpush1.msra.mxu0 0.0
    %214 = vmatprep.subr.mxu0 0.0
    %215 = vmatpush1.msra.mxu0 0.0
    %216 = vmatprep.subr.mxu0 0.0
    %217 = vmatpush1.msra.mxu0 0.0
    %218 = vmatprep.subr.mxu0 0.0
    %219 = vmatpush1.msra.mxu0 0.0
    %220 = vmatprep.subr.mxu0 0.0
    %221 = vmatpush1.msra.mxu0 0.0
    %222 = vmatprep.subr.mxu0 0.0
    %223 = vmatpush1.msra.mxu0 0.0
    %224 = vmatprep.subr.mxu0 0.0
    %225 = vmatpush1.msra.mxu0 0.0
    %226 = vmatprep.subr.mxu0 0.0
    %227 = vmatpush1.msra.mxu0 0.0
    %228 = vmatprep.subr.mxu0 0.0
    %229 = vmatpush1.msra.mxu0 0.0
    %230 = vmatprep.subr.mxu0 0.0
    %231 = vmatpush1.msra.mxu0 0.0
    %232 = vmatprep.subr.mxu0 0.0
    %233 = vmatpush1.msra.mxu0 0.0
    %234 = vmatprep.mubr.f32.mxu0 0.0
    %235 = vmatmul.mubr.f32.gmra.mrb[0].mxu0 %v162
    %v236 = vpop.f32.mrb[0].mxu0
    %v237 = vadd.f32 0.0, %v236
    %v238 = vpop.f32.mrb[0].mxu0
    %239 = vmatprep.mubr.f32.mxu0 0.0
    %240 = vmatmul.mubr.f32.gmra.mrb[0].mxu0 %v165
    %v241 = vpop.f32.mrb[0].mxu0
    %v242 = vadd.f32 0.0, %v241
    %v243 = vpop.f32.mrb[0].mxu0
    %244 = vdwg.mxu0
    %v246 = vsel %vm70, %v43, 0
    %v249 = vsel %vm70, %v44, 0
    %v252 = vsel %vm73, %v159, 0
    %254 = vmatprep.subr.mxu0 0.0
    %255 = vmatpush1.msra.mxu0 %v252
    %256 = vmatprep.subr.mxu0 0.0
    %257 = vmatpush1.msra.mxu0 0.0
    %258 = vmatprep.subr.mxu0 0.0
    %259 = vmatpush1.msra.mxu0 0.0
    %260 = vmatprep.subr.mxu0 0.0
    %261 = vmatpush1.msra.mxu0 0.0
    %262 = vmatprep.subr.mxu0 0.0
    %263 = vmatpush1.msra.mxu0 0.0
    %264 = vmatprep.subr.mxu0 0.0
    %265 = vmatpush1.msra.mxu0 0.0
    %266 = vmatprep.subr.mxu0 0.0
    %267 = vmatpush1.msra.mxu0 0.0
    %268 = vmatprep.subr.mxu0 0.0
    %269 = vmatpush1.msra.mxu0 0.0
    %270 = vmatprep.subr.mxu0 0.0
    %271 = vmatpush1.msra.mxu0 0.0
    %272 = vmatprep.subr.mxu0 0.0
    %273 = vmatpush1.msra.mxu0 0.0
    %274 = vmatprep.subr.mxu0 0.0
    %275 = vmatpush1.msra.mxu0 0.0
    %276 = vmatprep.subr.mxu0 0.0
    %277 = vmatpush1.msra.mxu0 0.0
    %278 = vmatprep.subr.mxu0 0.0
    %279 = vmatpush1.msra.mxu0 0.0
    %280 = vmatprep.subr.mxu0 0.0
    %281 = vmatpush1.msra.mxu0 0.0
    %282 = vmatprep.subr.mxu0 0.0
    %283 = vmatpush1.msra.mxu0 0.0
    %284 = vmatprep.subr.mxu0 0.0
    %285 = vmatpush1.msra.mxu0 0.0
    %286 = vmatprep.subr.mxu0 0.0
    %287 = vmatpush1.msra.mxu0 0.0
    %288 = vmatprep.subr.mxu0 0.0
    %289 = vmatpush1.msra.mxu0 0.0
    %290 = vmatprep.subr.mxu0 0.0
    %291 = vmatpush1.msra.mxu0 0.0
    %292 = vmatprep.subr.mxu0 0.0
    %293 = vmatpush1.msra.mxu0 0.0
    %294 = vmatprep.subr.mxu0 0.0
    %295 = vmatpush1.msra.mxu0 0.0
    %296 = vmatprep.subr.mxu0 0.0
    %297 = vmatpush1.msra.mxu0 0.0
    %298 = vmatprep.subr.mxu0 0.0
    %299 = vmatpush1.msra.mxu0 0.0
    %300 = vmatprep.subr.mxu0 0.0
    %301 = vmatpush1.msra.mxu0 0.0
    %302 = vmatprep.subr.mxu0 0.0
    %303 = vmatpush1.msra.mxu0 0.0
    %304 = vmatprep.subr.mxu0 0.0
    %305 = vmatpush1.msra.mxu0 0.0
    %306 = vmatprep.subr.mxu0 0.0
    %307 = vmatpush1.msra.mxu0 0.0
    %308 = vmatprep.subr.mxu0 0.0
    %309 = vmatpush1.msra.mxu0 0.0
    %310 = vmatprep.subr.mxu0 0.0
    %311 = vmatpush1.msra.mxu0 0.0
    %312 = vmatprep.subr.mxu0 0.0
    %313 = vmatpush1.msra.mxu0 0.0
    %314 = vmatprep.subr.mxu0 0.0
    %315 = vmatpush1.msra.mxu0 0.0
    %316 = vmatprep.subr.mxu0 0.0
    %317 = vmatpush1.msra.mxu0 0.0
    %318 = vmatprep.mubr.f32.mxu0 0.0
    %319 = vmatmul.mubr.f32.gmra.mrb[0].mxu0 %v246
    %v320 = vpop.f32.mrb[0].mxu0
    %v321 = vadd.f32 %v237, %v320
    %v322 = vpop.f32.mrb[0].mxu0
    %323 = vmatprep.mubr.f32.mxu0 0.0
    %324 = vmatmul.mubr.f32.gmra.mrb[0].mxu0 %v249
    %v325 = vpop.f32.mrb[0].mxu0
    %v326 = vadd.f32 %v242, %v325
    %v327 = vpop.f32.mrb[0].mxu0
    %328 = vdwg.mxu0
    %v331 = vunpack.c.l.s4 1966171168
    %v332 = vunpack.c.0.s8 %v331
    %v333 = vlaneseq
    %v334 = vshrl.u32 %v333, 7
    %v335 = vsub.s32 %v332, %v334
    %v336 = vrot.slane %v144, %v335
    %v337 = vcombine.high %v336, %v336
    %v339 = vunpack.c.l.s4 1966171168
    %v340 = vunpack.c.0.s8 %v339
    %v341 = vlaneseq
    %v342 = vshrl.u32 %v341, 7
    %v343 = vsub.s32 %v340, %v342
    %v344 = vrot.slane %v336, %v343
    %v346 = vunpack.c.l.s4 1966171168
    %v347 = vunpack.c.0.s8 %v346
    %v348 = vlaneseq
    %v349 = vshrl.u32 %v348, 7
    %v350 = vsub.s32 %v347, %v349
    %v351 = vrot.slane %v337, %v350
    %v352 = vlaneseq
    %v353 = vshrl.u32 %v352, 7
    %v354 = vsub.s32 0, %v353
    %v355 = vrot.slane %v344, %v354
    %v356 = vlaneseq
    %v357 = vshrl.u32 %v356, 7
    %v358 = vsub.s32 0, %v357
    %v359 = vrot.slane %v351, %v358
    %v362 = vadd.f32 %v321, %v355
    %v363 = vadd.f32 %v326, %v359
    %v364 = vld [vmem:[%s6] sm:$0x1]
    %v366 = vlaneseq
    %v367 = vshrl.u32 %v366, 7
    %v368 = vsub.s32 0, %v367
    %v369 = vrot.slane %v364, %v368
    %v371 = vmul.f32 %v362, %v369
    %v372 = vmul.f32 %v363, %v369
    %v373 = vld [vmem:[%s7] sm:$0x1]
    %v375 = vlaneseq
    %v376 = vshrl.u32 %v375, 7
    %v377 = vsub.s32 0, %v376
    %v378 = vrot.slane %v373, %v377
    %v380 = vadd.f32 %v371, %v378
    %v381 = vadd.f32 %v372, %v378
    %v382 = vxor.u32 %v380, 2147483648
    %v383 = vxor.u32 %v381, 2147483648
    %v384 = vmul.f32 %v382, 1.442695
    %v385 = vpow.pop %v384
    %v386 = vmul.f32 %v383, 1.442695
    %v387 = vpow.pop %v386
    %v388 = vadd.f32 %v385, 1.0
    %v389 = vadd.f32 %v387, 1.0
    %v390 = vrcp.pop %v388
    %v391 = vmul.f32 1.0, %v390
    %v392 = vrcp.pop %v389
    %v393 = vmul.f32 1.0, %v392
    %v394 = vld [vmem:[%s8] sm:$0x1]
    %v395 = vsub.f32 1.0, %v394
    %v397 = vlaneseq
    %v398 = vshrl.u32 %v397, 7
    %v399 = vsub.s32 0, %v398
    %v400 = vrot.slane %v395, %v399
    %v402 = vmul.f32 %v400, %v391
    %v403 = vmul.f32 %v400, %v393
    %v405 = vlaneseq
    %v406 = vshrl.u32 %v405, 7
    %v407 = vsub.s32 0, %v406
    %v408 = vrot.slane %v394, %v407
    %v410 = vadd.f32 %v408, %v402
    %v411 = vadd.f32 %v408, %v403
    %v412 = vmul.f32 %v362, %v410
    %v413 = vmul.f32 %v363, %v411
    %v414 = vld [vmem:[%s9] sm:$0x1]
    %v416 = vlaneseq
    %v417 = vshrl.u32 %v416, 7
    %v418 = vsub.s32 0, %v417
    %v419 = vrot.slane %v414, %v418
    %v421 = vmul.f32 %v412, %v419
    %v422 = vmul.f32 %v413, %v419
    %423 = vadd.xlane.f32.xlu0 %v421
    %v424 = vpop.xlane.xlu0 %423
    %425 = vadd.xlane.f32.xlu0 %v422
    %v426 = vpop.xlane.xlu0 %425
    %v427 = vld [vmem:[#allocation2] sm:$0x1]
    %v429 = vlaneseq
    %v430 = vshrl.u32 %v429, 7
    %v431 = vsub.s32 0, %v430
    %v432 = vrot.slane %v427, %v431
    %433 = vset.pattern.permute.xlu0 0
    %434 = vperm.xlu0 %433, %v432
    %v435 = vpop.permute.xlu0 %434
    %v437 = vadd.f32 %v424, %v435
    %v438 = vadd.f32 %v426, %v435
    %v441 = vlaneseq
    %v442 = vand.u32 %v441, 127
    %v443 = vlaneseq
    %v444 = vshrl.u32 %v443, 7
    %v445 = vsub.s32 %v442, %v444
    %v446 = vrot.slane %v437, %v445
    %v447 = vlaneseq
    %v448 = vshrl.u32 %v447, 7
    %v449 = vsub.s32 %v442, %v448
    %v450 = vrot.slane %v438, %v449
    %vm451 = vcmask 1041409
    %v452 = vsel %vm451, %v450, %v446
    %vm454 = vcmask 58368
    %455 = vst.msk [vmem:[#allocation3] sm:$0x3] %vm454, %v452
    // Predicated region
    $region46: #{tpu_custom_call.1} parent=1 // pred_check
      _
    $region47: #{tpu_custom_call.1} parent=1 // pred_check_branch
      %457 = sbr.rel (0) target = $region49
    $region48: #{tpu_custom_call.1} parent=1 // pred_region
      %s459 = ssub.s32 32, 32
      %460 = vsyncadd [#allocation4], %s459
      %s462 = sshll.u32 [#allocation3], 4
      %s463 = int_to_ptr.vmem [resolvable:$true] %s462
      %465 = dma.vmem_to_hbm [thread:$0]  %s463, 32, %s11, [#allocation4]
    $region49: #{tpu_custom_call.1} parent=1 // pred_fallthru
      _
    // Predicated region
    $region50: #{tpu_custom_call.1} parent=1 // pred_check
      _
    $region51: #{tpu_custom_call.1} parent=1 // pred_check_branch
      %467 = sbr.rel (0) target = $region53
    $region52: #{tpu_custom_call.1} parent=1 // pred_region
      %468 = dma.done [#allocation4], 32
    $region53: #{tpu_custom_call.1} parent=1 // pred_fallthru
      _
    %469 = vsyncpa [#allocation4], 1

</llo_original>
